<compile_context>
chip_gen: v7x
topology: tpu7x:2x2x1
jax: 0.10.0
libtpu: 0.0.40
codegen_flags: <defaults>
</compile_context>

<pallas_src>
import functools

import jax
import jax.numpy as jnp
from jax.experimental import pallas as pl
from jax.experimental.pallas import tpu as pltpu


def _temporal_block_kernel(*refs, K, d, L, has_downsample):
    """One batch-block: conv1->chomp->relu->conv2->chomp->relu (+res), relu.

    Ref layout (time folded with batch on the lane axis):
      x_ref   (C_in,  B*L) f32      w1_ref (C_out, K*C_in)  compute dtype
      b1_ref  (C_out, 1)   f32      w2_ref (C_out, K*C_out) compute dtype
      b2_ref  (C_out, 1)   f32      [wds_ref (C_out, C_in), bds_ref (C_out, 1)]
      out_ref (C_out, B*L) f32
    """
    if has_downsample:
        x_ref, w1_ref, b1_ref, w2_ref, b2_ref, wds_ref, bds_ref, out_ref = refs
    else:
        x_ref, w1_ref, b1_ref, w2_ref, b2_ref, out_ref = refs
        wds_ref = bds_ref = None

    x = x_ref[...]                       # (C_in, Lb) f32
    mxu_dtype = w1_ref.dtype             # bf16 (or f32)
    Lb = x.shape[-1]

    def causal_tap_stack(a):
        # a: (C, Lb). Row block j is `a` shifted right by (K-1-j)*d along time with
        # zeros shifted in at every length-L segment's left edge (== the causal
        # left pad + chomp of the PyTorch conv). Built entirely in vregs.
        C = a.shape[0]
        t_local = jax.lax.broadcasted_iota(jnp.int32, (C, Lb), 1) % L
        wins = []
        for j in range(K):
            s = (K - 1 - j) * d
            if s == 0:
                wins.append(a)
            elif s >= Lb:
                wins.append(jnp.zeros_like(a))
            else:
                shifted = jnp.concatenate(
                    [jnp.zeros((C, s), a.dtype), a[:, : Lb - s]], axis=1)
                wins.append(jnp.where(t_local >= s, shifted,
                                      jnp.zeros_like(shifted)))
        return jnp.concatenate(wins, axis=0)          # (K*C, Lb)

    # ---- conv1: all K taps in one MXU matmul, bias, ReLU.
    rhs1 = causal_tap_stack(x).astype(mxu_dtype)
    h1 = jnp.maximum(
        jnp.dot(w1_ref[...], rhs1, preferred_element_type=jnp.float32)
        + b1_ref[...], 0.0)
    # TODO(synk): nn.Dropout is identity in eval mode; no in-kernel PRNG mask.

    # ---- conv2: tap windows come straight from h1 in vregs (no VMEM round-trip).
    rhs2 = causal_tap_stack(h1).astype(mxu_dtype)
    h2 = jnp.maximum(
        jnp.dot(w2_ref[...], rhs2, preferred_element_type=jnp.float32)
        + b2_ref[...], 0.0)

    # ---- residual: 1x1 downsample conv if n_inputs != n_outputs, else identity.
    if has_downsample:
        res = jnp.dot(wds_ref[...], x.astype(mxu_dtype),
                      preferred_element_type=jnp.float32) + bds_ref[...]
    else:
        res = x

    out_ref[...] = jnp.maximum(h2 + res, 0.0).astype(out_ref.dtype)


def _pick_batch_block(N, L, target_lanes):
    """Smallest divisor of N giving >= target_lanes lanes per block (lane extent a
    multiple of 128 when the grid has more than one step); else the whole batch."""
    for b in range(1, N + 1):
        if N % b:
            continue
        if b * L >= target_lanes and (b == N or (b * L) % 128 == 0):
            return b
    return N


def temporal_block(x, w1, b1, w2, b2, wds=None, bds=None, *,
                   dilation, padding, compute_dtype=jnp.bfloat16,
                   target_lanes=512):
    """TCN TemporalBlock forward.

    x:  (N, C_in, L)                      w1: (C_out, C_in, K)   b1: (C_out,)
    w2: (C_out, C_out, K)  b2: (C_out,)   wds/bds: (C_out, C_in)/(C_out,) for the
    1x1 downsample conv, or None for the identity residual (C_in == C_out).
    """
    N, C_in, L = x.shape
    C_out, _, K = w1.shape
    d = dilation
    # Standard TCN setting (length-preserving causal conv via pad + chomp).
    assert padding == d * (K - 1), "expects padding == dilation * (kernel_size - 1)"
    has_ds = wds is not None
    if not has_ds:
        assert C_in == C_out, "identity residual requires n_inputs == n_outputs"

    # Lane-dense layout: channels on sublanes, batch*time folded onto lanes.
    xt = jnp.transpose(x, (1, 0, 2)).reshape(C_in, N * L).astype(jnp.float32)
    # Stack the K taps into the contraction dim (tap-major): (C_out, K*C).
    w1c = jnp.transpose(w1, (0, 2, 1)).reshape(C_out, K * C_in).astype(compute_dtype)
    w2c = jnp.transpose(w2, (0, 2, 1)).reshape(C_out, K * C_out).astype(compute_dtype)
    b1c = jnp.asarray(b1, jnp.float32).reshape(C_out, 1)
    b2c = jnp.asarray(b2, jnp.float32).reshape(C_out, 1)

    B_blk = _pick_batch_block(N, L, target_lanes)
    Lb = B_blk * L
    grid = (N // B_blk,)
    # TODO(synk): for very long sequences, additionally tile L with a p-lane halo
    # so a single batch element's row is not forced to fit VMEM.

    in_specs = [
        pl.BlockSpec((C_in, Lb), lambda i: (0, i)),            # activations
        pl.BlockSpec((C_out, K * C_in), lambda i: (0, 0)),     # conv1 weight (stacked)
        pl.BlockSpec((C_out, 1), lambda i: (0, 0)),            # conv1 bias
        pl.BlockSpec((C_out, K * C_out), lambda i: (0, 0)),    # conv2 weight (stacked)
        pl.BlockSpec((C_out, 1), lambda i: (0, 0)),            # conv2 bias
    ]
    args = [xt, w1c, b1c, w2c, b2c]
    if has_ds:
        in_specs += [pl.BlockSpec((C_out, C_in), lambda i: (0, 0)),
                     pl.BlockSpec((C_out, 1), lambda i: (0, 0))]
        args += [jnp.asarray(wds, jnp.float32).reshape(C_out, C_in).astype(compute_dtype),
                 jnp.asarray(bds, jnp.float32).reshape(C_out, 1)]

    kern = functools.partial(_temporal_block_kernel, K=K, d=d, L=L,
                             has_downsample=has_ds)
    out2d = pl.pallas_call(
        kern,
        out_shape=jax.ShapeDtypeStruct((C_out, N * L), jnp.float32),
        grid=grid,
        in_specs=in_specs,
        out_specs=pl.BlockSpec((C_out, Lb), lambda i: (0, i)),
        compiler_params=pltpu.CompilerParams(
            dimension_semantics=("parallel",)),   # v7x: batch blocks shard over 2 TCs
    )(*args)
    return jnp.transpose(out2d.reshape(C_out, N, L), (1, 0, 2))


# ----------------------------------------------------------------------------
# Pure-JAX reference (module semantics) + weight_norm helper for the test.
# ----------------------------------------------------------------------------
def weight_norm_weight(v, g):
    """PyTorch weight_norm (dim=0): w = g * v / ||v|| over (in_channels, kernel)."""
    norm = jnp.sqrt(jnp.sum(v * v, axis=(1, 2), keepdims=True))
    return g[:, None, None] * v / norm


def _ref_conv_chomp(x, w, b, *, dilation, padding, cast):
    # Dilated conv (pad both sides) + chomp == causal left pad; written tap-by-tap.
    N, C, L = x.shape
    K = w.shape[-1]
    xpad = jnp.pad(x, ((0, 0), (0, 0), (padding, 0)))
    out = jnp.zeros((N, w.shape[0], L), jnp.float32)
    for j in range(K):
        out = out + jnp.einsum(
            "oc,ncl->nol", cast(w[:, :, j]),
            cast(xpad[:, :, j * dilation: j * dilation + L]),
            preferred_element_type=jnp.float32)
    return out + b.reshape(1, -1, 1)


def ref_forward(x, w1, b1, w2, b2, wds, bds, *, dilation, padding, cast=None):
    """cast=None -> pure f32 module reference; cast=bf16 -> mirrors the kernel's
    bf16-MXU-input / f32-accumulate arithmetic for a tight correctness check."""
    cast = (lambda a: a) if cast is None else cast
    h1 = jax.nn.relu(_ref_conv_chomp(x, w1, b1, dilation=dilation,
                                     padding=padding, cast=cast))
    h2 = jax.nn.relu(_ref_conv_chomp(h1, w2, b2, dilation=dilation,
                                     padding=padding, cast=cast))
    if wds is None:
        res = x
    else:
        res = jnp.einsum("oc,ncl->nol", cast(wds), cast(x),
                         preferred_element_type=jnp.float32) + bds.reshape(1, -1, 1)
    return jax.nn.relu(h2 + res)


if __name__ == "__main__":
    def run_case(N, C_in, C_out, L, K, dilation, key):
        padding = (K - 1) * dilation
        ks = jax.random.split(key, 9)
        v1 = 0.01 * jax.random.normal(ks[0], (C_out, C_in, K), jnp.float32)
        g1 = 0.5 + jax.random.uniform(ks[1], (C_out,), jnp.float32)
        w1 = weight_norm_weight(v1, g1)                      # (C_out, C_in, K)
        b1 = 0.01 * jax.random.normal(ks[2], (C_out,), jnp.float32)
        v2 = 0.01 * jax.random.normal(ks[3], (C_out, C_out, K), jnp.float32)
        g2 = 0.5 + jax.random.uniform(ks[4], (C_out,), jnp.float32)
        w2 = weight_norm_weight(v2, g2)                      # (C_out, C_out, K)
        b2 = 0.01 * jax.random.normal(ks[5], (C_out,), jnp.float32)
        if C_in != C_out:
            wds = 0.01 * jax.random.normal(ks[6], (C_out, C_in), jnp.float32)
            bds = 0.01 * jax.random.normal(ks[7], (C_out,), jnp.float32)
        else:
            wds = bds = None                                  # identity residual
        x = jax.random.normal(ks[8], (N, C_in, L), jnp.float32)

        out = temporal_block(x, w1, b1, w2, b2, wds, bds,
                             dilation=dilation, padding=padding,
                             compute_dtype=jnp.bfloat16)
        out = jax.block_until_ready(out)
        assert out.shape == (N, C_out, L)

        # Tight check vs a reference using the same bf16-input / f32-acc matmuls.
        bf16 = lambda a: a.astype(jnp.bfloat16)
        ref_mixed = ref_forward(x, w1, b1, w2, b2, wds, bds,
                                dilation=dilation, padding=padding, cast=bf16)
        assert jnp.allclose(out, ref_mixed, atol=1e-3, rtol=1e-3), \
            "mismatch vs bf16-matched reference"

        # Loose check vs the pure-f32 module semantics (bf16 MXU rounding only).
        ref_f32 = ref_forward(x, w1, b1, w2, b2, wds, bds,
                              dilation=dilation, padding=padding, cast=None)
        assert jnp.allclose(out, ref_f32, atol=1e-1, rtol=1e-1), \
            "mismatch vs f32 module reference"

    key = jax.random.PRNGKey(0)
    # downsample-residual case (n_inputs != n_outputs)
    run_case(N=2, C_in=4, C_out=8, L=16, K=3, dilation=2,
             key=jax.random.fold_in(key, 0))
    # identity-residual case (n_inputs == n_outputs)
    run_case(N=2, C_in=8, C_out=8, L=16, K=3, dilation=1,
             key=jax.random.fold_in(key, 1))
    print("KERNEL_OK")
</pallas_src>

<mosaic_0001>
module attributes {stable_mosaic.version = 11 : i64} {
  func.func @_temporal_block_kernel(%arg0: i32, %arg1: memref<4x32xf32, #tpu.memory_space<vmem>>, %arg2: memref<8x12xbf16, #tpu.memory_space<vmem>>, %arg3: memref<8x1xf32, #tpu.memory_space<vmem>>, %arg4: memref<8x24xbf16, #tpu.memory_space<vmem>>, %arg5: memref<8x1xf32, #tpu.memory_space<vmem>>, %arg6: memref<8x4xbf16, #tpu.memory_space<vmem>>, %arg7: memref<8x1xf32, #tpu.memory_space<vmem>>, %arg8: memref<8x32xf32, #tpu.memory_space<vmem>>) attributes {dimension_semantics = [#tpu.dimension_semantics<parallel>], iteration_bounds = array<i64: 1>, scalar_prefetch = 0 : i64, scratch_operands = 0 : i64, tpu.core_type = #tpu.core_type<tc>, window_params = [{transform_indices = @transform_0, window_bounds = array<i64: 4, 32>}, {pipeline_mode = #tpu.pipeline_mode<synchronous>, transform_indices = @transform_1, window_bounds = array<i64: 8, 12>}, {pipeline_mode = #tpu.pipeline_mode<synchronous>, transform_indices = @transform_2, window_bounds = array<i64: 8, 1>}, {pipeline_mode = #tpu.pipeline_mode<synchronous>, transform_indices = @transform_3, window_bounds = array<i64: 8, 24>}, {pipeline_mode = #tpu.pipeline_mode<synchronous>, transform_indices = @transform_4, window_bounds = array<i64: 8, 1>}, {pipeline_mode = #tpu.pipeline_mode<synchronous>, transform_indices = @transform_5, window_bounds = array<i64: 8, 4>}, {pipeline_mode = #tpu.pipeline_mode<synchronous>, transform_indices = @transform_6, window_bounds = array<i64: 8, 1>}, {transform_indices = @transform_7, window_bounds = array<i64: 8, 32>}]} {
    %c0 = arith.constant 0 : index
    %c0_0 = arith.constant 0 : index
    %0 = vector.load %arg1[%c0, %c0_0] : memref<4x32xf32, #tpu.memory_space<vmem>>, vector<4x32xf32>
    %1 = tpu.iota {dimensions = array<i32: 1>} : vector<4x32xi32>
    %c16_i32 = arith.constant 16 : i32
    %c0_i32 = arith.constant 0 : i32
    %2 = arith.cmpi eq, %c16_i32, %c0_i32 : i32
    %c1_i32 = arith.constant 1 : i32
    %3 = arith.select %2, %c1_i32, %c16_i32 : i32
    %4 = vector.broadcast %3 : i32 to vector<4x32xi32>
    %5 = arith.remsi %1, %4 : vector<4x32xi32>
    %c0_i32_1 = arith.constant 0 : i32
    %6 = vector.broadcast %c0_i32_1 : i32 to vector<4x32xi32>
    %7 = arith.cmpi ne, %5, %6 : vector<4x32xi32>
    %c0_i32_2 = arith.constant 0 : i32
    %8 = vector.broadcast %c0_i32_2 : i32 to vector<4x32xi32>
    %9 = arith.cmpi slt, %5, %8 : vector<4x32xi32>
    %c0_i32_3 = arith.constant 0 : i32
    %10 = arith.cmpi slt, %3, %c0_i32_3 : i32
    %11 = vector.broadcast %10 : i1 to vector<4x32xi1>
    %12 = vector.broadcast %11 : vector<4x32xi1> to vector<4x32xi1>
    %13 = arith.xori %9, %12 : vector<4x32xi1>
    %14 = arith.andi %13, %7 : vector<4x32xi1>
    %15 = vector.broadcast %3 : i32 to vector<4x32xi32>
    %16 = arith.addi %5, %15 : vector<4x32xi32>
    %17 = arith.select %14, %16, %5 : vector<4x32xi1>, vector<4x32xi32>
    %cst = arith.constant 0.000000e+00 : f32
    %18 = vector.broadcast %cst : f32 to vector<4x4xf32>
    %19 = vector.extract_strided_slice %0 {offsets = [0, 0], sizes = [4, 28], strides = [1, 1]} : vector<4x32xf32> to vector<4x28xf32>
    %20 = tpu.concatenate %18, %19 in 1 : vector<4x4xf32>, vector<4x28xf32> -> vector<4x32xf32>
    %c4_i32 = arith.constant 4 : i32
    %21 = vector.broadcast %c4_i32 : i32 to vector<4x32xi32>
    %22 = arith.cmpi sge, %17, %21 : vector<4x32xi32>
    %cst_4 = arith.constant 0.000000e+00 : f32
    %23 = vector.broadcast %cst_4 : f32 to vector<4x32xf32>
    %24 = arith.select %22, %20, %23 : vector<4x32xi1>, vector<4x32xf32>
    %cst_5 = arith.constant 0.000000e+00 : f32
    %25 = vector.broadcast %cst_5 : f32 to vector<4x2xf32>
    %26 = vector.extract_strided_slice %0 {offsets = [0, 0], sizes = [4, 30], strides = [1, 1]} : vector<4x32xf32> to vector<4x30xf32>
    %27 = tpu.concatenate %25, %26 in 1 : vector<4x2xf32>, vector<4x30xf32> -> vector<4x32xf32>
    %c2_i32 = arith.constant 2 : i32
    %28 = vector.broadcast %c2_i32 : i32 to vector<4x32xi32>
    %29 = arith.cmpi sge, %17, %28 : vector<4x32xi32>
    %cst_6 = arith.constant 0.000000e+00 : f32
    %30 = vector.broadcast %cst_6 : f32 to vector<4x32xf32>
    %31 = arith.select %29, %27, %30 : vector<4x32xi1>, vector<4x32xf32>
    %32 = tpu.concatenate %24, %31, %0 in 0 : vector<4x32xf32>, vector<4x32xf32>, vector<4x32xf32> -> vector<12x32xf32>
    %33 = arith.truncf %32 : vector<12x32xf32> to vector<12x32xbf16>
    %c0_7 = arith.constant 0 : index
    %c0_8 = arith.constant 0 : index
    %34 = vector.load %arg2[%c0_7, %c0_8] : memref<8x12xbf16, #tpu.memory_space<vmem>>, vector<8x12xbf16>
    %cst_9 = arith.constant dense<0.000000e+00> : vector<8x32xf32>
    %35 = tpu.matmul %34, %33, %cst_9 {dimension_numbers = #tpu.dot_dimension_numbers<[1], [0], [0], [1], [0, 0, 1, 1], [], []>} : vector<8x12xbf16>, vector<12x32xbf16>, vector<8x32xf32> -> vector<8x32xf32>
    %c0_10 = arith.constant 0 : index
    %c0_11 = arith.constant 0 : index
    %36 = vector.load %arg3[%c0_10, %c0_11] : memref<8x1xf32, #tpu.memory_space<vmem>>, vector<8x1xf32>
    %37 = vector.broadcast %36 : vector<8x1xf32> to vector<8x32xf32>
    %38 = arith.addf %35, %37 : vector<8x32xf32>
    %cst_12 = arith.constant 0.000000e+00 : f32
    %39 = vector.broadcast %cst_12 : f32 to vector<8x32xf32>
    %40 = arith.maximumf %38, %39 : vector<8x32xf32>
    %41 = tpu.iota {dimensions = array<i32: 1>} : vector<8x32xi32>
    %c16_i32_13 = arith.constant 16 : i32
    %c0_i32_14 = arith.constant 0 : i32
    %42 = arith.cmpi eq, %c16_i32_13, %c0_i32_14 : i32
    %c1_i32_15 = arith.constant 1 : i32
    %43 = arith.select %42, %c1_i32_15, %c16_i32_13 : i32
    %44 = vector.broadcast %43 : i32 to vector<8x32xi32>
    %45 = arith.remsi %41, %44 : vector<8x32xi32>
    %c0_i32_16 = arith.constant 0 : i32
    %46 = vector.broadcast %c0_i32_16 : i32 to vector<8x32xi32>
    %47 = arith.cmpi ne, %45, %46 : vector<8x32xi32>
    %c0_i32_17 = arith.constant 0 : i32
    %48 = vector.broadcast %c0_i32_17 : i32 to vector<8x32xi32>
    %49 = arith.cmpi slt, %45, %48 : vector<8x32xi32>
    %c0_i32_18 = arith.constant 0 : i32
    %50 = arith.cmpi slt, %43, %c0_i32_18 : i32
    %51 = vector.broadcast %50 : i1 to vector<8x32xi1>
    %52 = vector.broadcast %51 : vector<8x32xi1> to vector<8x32xi1>
    %53 = arith.xori %49, %52 : vector<8x32xi1>
    %54 = arith.andi %53, %47 : vector<8x32xi1>
    %55 = vector.broadcast %43 : i32 to vector<8x32xi32>
    %56 = arith.addi %45, %55 : vector<8x32xi32>
    %57 = arith.select %54, %56, %45 : vector<8x32xi1>, vector<8x32xi32>
    %cst_19 = arith.constant 0.000000e+00 : f32
    %58 = vector.broadcast %cst_19 : f32 to vector<8x4xf32>
    %59 = vector.extract_strided_slice %40 {offsets = [0, 0], sizes = [8, 28], strides = [1, 1]} : vector<8x32xf32> to vector<8x28xf32>
    %60 = tpu.concatenate %58, %59 in 1 : vector<8x4xf32>, vector<8x28xf32> -> vector<8x32xf32>
    %c4_i32_20 = arith.constant 4 : i32
    %61 = vector.broadcast %c4_i32_20 : i32 to vector<8x32xi32>
    %62 = arith.cmpi sge, %57, %61 : vector<8x32xi32>
    %cst_21 = arith.constant 0.000000e+00 : f32
    %63 = vector.broadcast %cst_21 : f32 to vector<8x32xf32>
    %64 = arith.select %62, %60, %63 : vector<8x32xi1>, vector<8x32xf32>
    %cst_22 = arith.constant 0.000000e+00 : f32
    %65 = vector.broadcast %cst_22 : f32 to vector<8x2xf32>
    %66 = vector.extract_strided_slice %40 {offsets = [0, 0], sizes = [8, 30], strides = [1, 1]} : vector<8x32xf32> to vector<8x30xf32>
    %67 = tpu.concatenate %65, %66 in 1 : vector<8x2xf32>, vector<8x30xf32> -> vector<8x32xf32>
    %c2_i32_23 = arith.constant 2 : i32
    %68 = vector.broadcast %c2_i32_23 : i32 to vector<8x32xi32>
    %69 = arith.cmpi sge, %57, %68 : vector<8x32xi32>
    %cst_24 = arith.constant 0.000000e+00 : f32
    %70 = vector.broadcast %cst_24 : f32 to vector<8x32xf32>
    %71 = arith.select %69, %67, %70 : vector<8x32xi1>, vector<8x32xf32>
    %72 = tpu.concatenate %64, %71, %40 in 0 : vector<8x32xf32>, vector<8x32xf32>, vector<8x32xf32> -> vector<24x32xf32>
    %73 = arith.truncf %72 : vector<24x32xf32> to vector<24x32xbf16>
    %c0_25 = arith.constant 0 : index
    %c0_26 = arith.constant 0 : index
    %74 = vector.load %arg4[%c0_25, %c0_26] : memref<8x24xbf16, #tpu.memory_space<vmem>>, vector<8x24xbf16>
    %cst_27 = arith.constant dense<0.000000e+00> : vector<8x32xf32>
    %75 = tpu.matmul %74, %73, %cst_27 {dimension_numbers = #tpu.dot_dimension_numbers<[1], [0], [0], [1], [0, 0, 1, 1], [], []>} : vector<8x24xbf16>, vector<24x32xbf16>, vector<8x32xf32> -> vector<8x32xf32>
    %c0_28 = arith.constant 0 : index
    %c0_29 = arith.constant 0 : index
    %76 = vector.load %arg5[%c0_28, %c0_29] : memref<8x1xf32, #tpu.memory_space<vmem>>, vector<8x1xf32>
    %77 = vector.broadcast %76 : vector<8x1xf32> to vector<8x32xf32>
    %78 = arith.addf %75, %77 : vector<8x32xf32>
    %cst_30 = arith.constant 0.000000e+00 : f32
    %79 = vector.broadcast %cst_30 : f32 to vector<8x32xf32>
    %80 = arith.maximumf %78, %79 : vector<8x32xf32>
    %c0_31 = arith.constant 0 : index
    %c0_32 = arith.constant 0 : index
    %81 = vector.load %arg6[%c0_31, %c0_32] : memref<8x4xbf16, #tpu.memory_space<vmem>>, vector<8x4xbf16>
    %82 = arith.truncf %0 : vector<4x32xf32> to vector<4x32xbf16>
    %cst_33 = arith.constant dense<0.000000e+00> : vector<8x32xf32>
    %83 = tpu.matmul %81, %82, %cst_33 {dimension_numbers = #tpu.dot_dimension_numbers<[1], [0], [0], [1], [0, 0, 1, 1], [], []>} : vector<8x4xbf16>, vector<4x32xbf16>, vector<8x32xf32> -> vector<8x32xf32>
    %c0_34 = arith.constant 0 : index
    %c0_35 = arith.constant 0 : index
    %84 = vector.load %arg7[%c0_34, %c0_35] : memref<8x1xf32, #tpu.memory_space<vmem>>, vector<8x1xf32>
    %85 = vector.broadcast %84 : vector<8x1xf32> to vector<8x32xf32>
    %86 = arith.addf %83, %85 : vector<8x32xf32>
    %87 = arith.addf %80, %86 : vector<8x32xf32>
    %cst_36 = arith.constant 0.000000e+00 : f32
    %88 = vector.broadcast %cst_36 : f32 to vector<8x32xf32>
    %89 = arith.maximumf %87, %88 : vector<8x32xf32>
    %c0_37 = arith.constant 0 : index
    %c0_38 = arith.constant 0 : index
    %90 = vector.load %arg8[%c0_37, %c0_38] : memref<8x32xf32, #tpu.memory_space<vmem>>, vector<8x32xf32>
    tpu.vector_store %arg8[%c0_37, %c0_38], %89 {strides = array<i32>} : memref<8x32xf32, #tpu.memory_space<vmem>>, vector<8x32xf32>,
    return
  }
  func.func @transform_0(%arg0: i32) -> (i32, i32) {
    %c0_i32 = arith.constant 0 : i32
    %c0_i32_0 = arith.constant 0 : i32
    return %c0_i32, %arg0 : i32, i32
  }
  func.func @transform_1(%arg0: i32) -> (i32, i32) {
    %c0_i32 = arith.constant 0 : i32
    %c0_i32_0 = arith.constant 0 : i32
    %c0_i32_1 = arith.constant 0 : i32
    return %c0_i32, %c0_i32_0 : i32, i32
  }
  func.func @transform_2(%arg0: i32) -> (i32, i32) {
    %c0_i32 = arith.constant 0 : i32
    %c0_i32_0 = arith.constant 0 : i32
    %c0_i32_1 = arith.constant 0 : i32
    return %c0_i32, %c0_i32_0 : i32, i32
  }
  func.func @transform_3(%arg0: i32) -> (i32, i32) {
    %c0_i32 = arith.constant 0 : i32
    %c0_i32_0 = arith.constant 0 : i32
    %c0_i32_1 = arith.constant 0 : i32
    return %c0_i32, %c0_i32_0 : i32, i32
  }
  func.func @transform_4(%arg0: i32) -> (i32, i32) {
    %c0_i32 = arith.constant 0 : i32
    %c0_i32_0 = arith.constant 0 : i32
    %c0_i32_1 = arith.constant 0 : i32
    return %c0_i32, %c0_i32_0 : i32, i32
  }
  func.func @transform_5(%arg0: i32) -> (i32, i32) {
    %c0_i32 = arith.constant 0 : i32
    %c0_i32_0 = arith.constant 0 : i32
    %c0_i32_1 = arith.constant 0 : i32
    return %c0_i32, %c0_i32_0 : i32, i32
  }
  func.func @transform_6(%arg0: i32) -> (i32, i32) {
    %c0_i32 = arith.constant 0 : i32
    %c0_i32_0 = arith.constant 0 : i32
    %c0_i32_1 = arith.constant 0 : i32
    return %c0_i32, %c0_i32_0 : i32, i32
  }
  func.func @transform_7(%arg0: i32) -> (i32, i32) {
    %c0_i32 = arith.constant 0 : i32
    %c0_i32_0 = arith.constant 0 : i32
    return %c0_i32, %arg0 : i32, i32
  }
}

</mosaic_0001>

<llo_original>
// kernel: tpu_custom_call.1
$region0: #{tpu_custom_call.1}
  #allocation0 [shape = 'u32[]', space=smem, size = 0x4, offset = 0x4, fixed_abs, tag = 'smem constant byte address 0x4 - core index']
  #allocation1 [shape = 'u32[144,128]{1,0:T(1,128)}', space=vmem, size = 0x12000, scoped, tag = 'internal scratch']
  %s0 = inlined_call_operand.vmem [shape: f32[4,32], index: 0, kind: input, shape index: {}]
  %s1 = inlined_call_operand.vmem [shape: bf16[8,12], index: 1, kind: input, shape index: {}]
  %s2 = inlined_call_operand.vmem [shape: f32[8,1], index: 2, kind: input, shape index: {}]
  %s3 = inlined_call_operand.vmem [shape: bf16[8,24], index: 3, kind: input, shape index: {}]
  %s4 = inlined_call_operand.vmem [shape: f32[8,1], index: 4, kind: input, shape index: {}]
  %s5 = inlined_call_operand.vmem [shape: bf16[8,4], index: 5, kind: input, shape index: {}]
  %s6 = inlined_call_operand.vmem [shape: f32[8,1], index: 6, kind: input, shape index: {}]
  %s7 = inlined_call_operand.hbm [shape: f32[8,32], index: 7, kind: output, shape index: {}]
  %s8 = sld [smem:[#allocation0]]
  $region38: #{tpu_custom_call.1} parent=0
    _
  %s10 = ssub.s32 1, %s8
  %s11 = scalar_select 0, %s10, %s8
  $region1: #{tpu_custom_call.1} parent=0
    #allocation2 [shape = 'u8[4096]{0}', space=vmem, size = 0x1000, scoped, tag = 'output window, operand 0, single buffered']
    #allocation3 [shape = 's32[1]{0}', space=sflag, size = 0x4, scoped, tag = 'scoped memory for tpu_custom_call.1']
    %12 = vsyncpa [#allocation3], 0
    // Predicated region
    $region2: #{tpu_custom_call.1} parent=1 // pred_check
      _
    $region3: #{tpu_custom_call.1} parent=1 // pred_check_branch
      %14 = sbr.rel (0) target = $region5
    $region4: #{tpu_custom_call.1} parent=1 // pred_region
      _
    $region5: #{tpu_custom_call.1} parent=1 // pred_fallthru
      _
    // Predicated region
    $region6: #{tpu_custom_call.1} parent=1 // pred_check
      _
    $region7: #{tpu_custom_call.1} parent=1 // pred_check_branch
      %16 = sbr.rel (0) target = $region9
    $region8: #{tpu_custom_call.1} parent=1 // pred_region
      _
    $region9: #{tpu_custom_call.1} parent=1 // pred_fallthru
      _
    // Predicated region
    $region10: #{tpu_custom_call.1} parent=1 // pred_check
      _
    $region11: #{tpu_custom_call.1} parent=1 // pred_check_branch
      %18 = sbr.rel (0) target = $region13
    $region12: #{tpu_custom_call.1} parent=1 // pred_region
      _
    $region13: #{tpu_custom_call.1} parent=1 // pred_fallthru
      _
    // Predicated region
    $region14: #{tpu_custom_call.1} parent=1 // pred_check
      _
    $region15: #{tpu_custom_call.1} parent=1 // pred_check_branch
      %20 = sbr.rel (0) target = $region17
    $region16: #{tpu_custom_call.1} parent=1 // pred_region
      _
    $region17: #{tpu_custom_call.1} parent=1 // pred_fallthru
      _
    // Predicated region
    $region18: #{tpu_custom_call.1} parent=1 // pred_check
      _
    $region19: #{tpu_custom_call.1} parent=1 // pred_check_branch
      %22 = sbr.rel (0) target = $region21
    $region20: #{tpu_custom_call.1} parent=1 // pred_region
      _
    $region21: #{tpu_custom_call.1} parent=1 // pred_fallthru
      _
    // Predicated region
    $region22: #{tpu_custom_call.1} parent=1 // pred_check
      _
    $region23: #{tpu_custom_call.1} parent=1 // pred_check_branch
      %24 = sbr.rel (0) target = $region25
    $region24: #{tpu_custom_call.1} parent=1 // pred_region
      _
    $region25: #{tpu_custom_call.1} parent=1 // pred_fallthru
      _
    // Predicated region
    $region26: #{tpu_custom_call.1} parent=1 // pred_check
      _
    $region27: #{tpu_custom_call.1} parent=1 // pred_check_branch
      %26 = sbr.rel (0) target = $region29
    $region28: #{tpu_custom_call.1} parent=1 // pred_region
      _
    $region29: #{tpu_custom_call.1} parent=1 // pred_fallthru
      _
    %v28 = vld [vmem:[%s0] sm:$0xf]
    %v29 = vlaneseq
    %v30 = vand.u32 %v29, 127
    %vm31 = vcmp.lt.s32.totalorder %v30, 0
    %v32 = vsub.s32 0, %v30
    %v33 = vsel %vm31, %v32, %v30
    %v34 = vshrl.u32 %v33, 4
    %v35 = vand.u32 %v33, 15
    %v36 = vsub.s32 0, %v35
    %v37 = vsel %vm31, %v36, %v35
    %vm38 = vcmp.ne.s32.totalorder %v37, 0
    %vm39 = vcmp.lt.s32.totalorder %v37, 0
    %vm40 = vmand %vm39, %vm38
    %v41 = vadd.s32 %v37, 16
    %v42 = vsel %vm40, %v41, %v37
    %44 = vrot.lane.b32.xlu0 %v28, 4
    %v45 = vpop.permute.xlu0 %44
    %vm47 = vcmask 31744
    %v48 = vsel %vm47, 0.0, %v45
    %vm49 = vcmp.ge.s32.totalorder %v42, 4
    %v50 = vsel %vm49, %v48, 0.0
    %51 = vrot.lane.b32.xlu0 %v28, 2
    %v52 = vpop.permute.xlu0 %51
    %vm54 = vcmask 15360
    %v55 = vsel %vm54, 0.0, %v52
    %vm56 = vcmp.ge.s32.totalorder %v42, 2
    %v57 = vsel %vm56, %v55, 0.0
    %v59 = vrot.slane %v57, 4
    %vm61 = vcmask 1043456
    %v62 = vsel %vm61, %v50, %v59
    %v63 = vpack.c.bf16 %v28, %v62
    %v64 = vld [vmem:[%s1] sm:$0xf]
    %v65 = vld [vmem:[%s2] sm:$0xff]
    %67 = vset.pattern.permute.xlu0 0
    %68 = vperm.xlu0 %67, %v65
    %v69 = vpop.permute.xlu0 %68
    %vm71 = vcmask 97280
    %v73 = vsel %vm71, %v64, 0
    %vm75 = vcmask 1045504
    %v77 = vsel %vm75, %v63, 0
    %79 = vmatprep.subr.bf16.mxu0 0
    %80 = vmatpush1.bf16.msra.mxu0 %v77
    %81 = vmatprep.subr.bf16.mxu0 0
    %82 = vmatpush1.bf16.msra.mxu0 0
    %83 = vmatprep.subr.bf16.mxu0 0
    %84 = vmatpush1.bf16.msra.mxu0 0
    %85 = vmatprep.subr.bf16.mxu0 0
    %86 = vmatpush1.bf16.msra.mxu0 0
    %87 = vmatprep.subr.bf16.mxu0 0
    %88 = vmatpush1.bf16.msra.mxu0 0
    %89 = vmatprep.subr.bf16.mxu0 0
    %90 = vmatpush1.bf16.msra.mxu0 0
    %91 = vmatprep.subr.bf16.mxu0 0
    %92 = vmatpush1.bf16.msra.mxu0 0
    %93 = vmatprep.subr.bf16.mxu0 0
    %94 = vmatpush1.bf16.msra.mxu0 0
    %95 = vmatprep.subr.bf16.mxu0 0
    %96 = vmatpush1.bf16.msra.mxu0 0
    %97 = vmatprep.subr.bf16.mxu0 0
    %98 = vmatpush1.bf16.msra.mxu0 0
    %99 = vmatprep.subr.bf16.mxu0 0
    %100 = vmatpush1.bf16.msra.mxu0 0
    %101 = vmatprep.subr.bf16.mxu0 0
    %102 = vmatpush1.bf16.msra.mxu0 0
    %103 = vmatprep.subr.bf16.mxu0 0
    %104 = vmatpush1.bf16.msra.mxu0 0
    %105 = vmatprep.subr.bf16.mxu0 0
    %106 = vmatpush1.bf16.msra.mxu0 0
    %107 = vmatprep.subr.bf16.mxu0 0
    %108 = vmatpush1.bf16.msra.mxu0 0
    %109 = vmatprep.subr.bf16.mxu0 0
    %110 = vmatpush1.bf16.msra.mxu0 0
    %111 = vmatprep.mubr.bf16.mxu0 0
    %112 = vmatmul.mubr.bf16.gmra.mrb[0].mxu0 %v73
    %v113 = vpop.f32.mrb[0].mxu0
    %v114 = vadd.f32 %v69, %v113
    %v115 = vpop.f32.mrb[0].mxu0
    %v116 = vpop.f32.mrb[0].mxu0
    %v117 = vpop.f32.mrb[0].mxu0
    %118 = vdwg.mxu0
    %v119 = vmax.f32 %v114, 0.0
    %121 = vrot.lane.b32.xlu0 %v119, 4
    %v122 = vpop.permute.xlu0 %121
    %v124 = vsel %vm47, 0.0, %v122
    %v125 = vsel %vm49, %v124, 0.0
    %126 = vrot.lane.b32.xlu0 %v119, 2
    %v127 = vpop.permute.xlu0 %126
    %v129 = vsel %vm54, 0.0, %v127
    %v130 = vsel %vm56, %v129, 0.0
    %v131 = vpack.c.bf16 %v130, %v125
    %v132 = vpack.c.bf16 %v119, %v119
    %v133 = vld [vmem:[%s3] sm:$0xf]
    %v134 = vld [vmem:[%s4] sm:$0xff]
    %136 = vset.pattern.permute.xlu0 0
    %137 = vperm.xlu0 %136, %v134
    %v138 = vpop.permute.xlu0 %137
    %vm140 = vcmask 195584
    %v142 = vsel %vm140, %v133, 0
    %v145 = vsel %vm61, %v132, 0
    %147 = vmatprep.subr.bf16.mxu0 0
    %148 = vmatpush1.bf16.msra.mxu0 %v131
    %149 = vmatprep.subr.bf16.mxu0 0
    %150 = vmatpush1.bf16.msra.mxu0 %v145
    %151 = vmatprep.subr.bf16.mxu0 0
    %152 = vmatpush1.bf16.msra.mxu0 0
    %153 = vmatprep.subr.bf16.mxu0 0
    %154 = vmatpush1.bf16.msra.mxu0 0
    %155 = vmatprep.subr.bf16.mxu0 0
    %156 = vmatpush1.bf16.msra.mxu0 0
    %157 = vmatprep.subr.bf16.mxu0 0
    %158 = vmatpush1.bf16.msra.mxu0 0
    %159 = vmatprep.subr.bf16.mxu0 0
    %160 = vmatpush1.bf16.msra.mxu0 0
    %161 = vmatprep.subr.bf16.mxu0 0
    %162 = vmatpush1.bf16.msra.mxu0 0
    %163 = vmatprep.subr.bf16.mxu0 0
    %164 = vmatpush1.bf16.msra.mxu0 0
    %165 = vmatprep.subr.bf16.mxu0 0
    %166 = vmatpush1.bf16.msra.mxu0 0
    %167 = vmatprep.subr.bf16.mxu0 0
    %168 = vmatpush1.bf16.msra.mxu0 0
    %169 = vmatprep.subr.bf16.mxu0 0
    %170 = vmatpush1.bf16.msra.mxu0 0
    %171 = vmatprep.subr.bf16.mxu0 0
    %172 = vmatpush1.bf16.msra.mxu0 0
    %173 = vmatprep.subr.bf16.mxu0 0
    %174 = vmatpush1.bf16.msra.mxu0 0
    %175 = vmatprep.subr.bf16.mxu0 0
    %176 = vmatpush1.bf16.msra.mxu0 0
    %177 = vmatprep.subr.bf16.mxu0 0
    %178 = vmatpush1.bf16.msra.mxu0 0
    %179 = vmatprep.mubr.bf16.mxu0 0
    %180 = vmatmul.mubr.bf16.gmra.mrb[0].mxu0 %v142
    %v181 = vpop.f32.mrb[0].mxu0
    %v182 = vadd.f32 %v138, %v181
    %v183 = vpop.f32.mrb[0].mxu0
    %v184 = vpop.f32.mrb[0].mxu0
    %v185 = vpop.f32.mrb[0].mxu0
    %186 = vdwg.mxu0
    %v187 = vmax.f32 %v182, 0.0
    %v188 = vld [vmem:[%s5] sm:$0xf]
    %v189 = vpack.c.bf16 %v28, %v28
    %v190 = vld [vmem:[%s6] sm:$0xff]
    %192 = vset.pattern.permute.xlu0 0
    %193 = vperm.xlu0 %192, %v190
    %v194 = vpop.permute.xlu0 %193
    %v197 = vsel %vm47, %v188, 0
    %vm199 = vcmask 1041408
    %v201 = vsel %vm199, %v189, 0
    %203 = vmatprep.subr.bf16.mxu0 0
    %204 = vmatpush1.bf16.msra.mxu0 %v201
    %205 = vmatprep.subr.bf16.mxu0 0
    %206 = vmatpush1.bf16.msra.mxu0 0
    %207 = vmatprep.subr.bf16.mxu0 0
    %208 = vmatpush1.bf16.msra.mxu0 0
    %209 = vmatprep.subr.bf16.mxu0 0
    %210 = vmatpush1.bf16.msra.mxu0 0
    %211 = vmatprep.subr.bf16.mxu0 0
    %212 = vmatpush1.bf16.msra.mxu0 0
    %213 = vmatprep.subr.bf16.mxu0 0
    %214 = vmatpush1.bf16.msra.mxu0 0
    %215 = vmatprep.subr.bf16.mxu0 0
    %216 = vmatpush1.bf16.msra.mxu0 0
    %217 = vmatprep.subr.bf16.mxu0 0
    %218 = vmatpush1.bf16.msra.mxu0 0
    %219 = vmatprep.subr.bf16.mxu0 0
    %220 = vmatpush1.bf16.msra.mxu0 0
    %221 = vmatprep.subr.bf16.mxu0 0
    %222 = vmatpush1.bf16.msra.mxu0 0
    %223 = vmatprep.subr.bf16.mxu0 0
    %224 = vmatpush1.bf16.msra.mxu0 0
    %225 = vmatprep.subr.bf16.mxu0 0
    %226 = vmatpush1.bf16.msra.mxu0 0
    %227 = vmatprep.subr.bf16.mxu0 0
    %228 = vmatpush1.bf16.msra.mxu0 0
    %229 = vmatprep.subr.bf16.mxu0 0
    %230 = vmatpush1.bf16.msra.mxu0 0
    %231 = vmatprep.subr.bf16.mxu0 0
    %232 = vmatpush1.bf16.msra.mxu0 0
    %233 = vmatprep.subr.bf16.mxu0 0
    %234 = vmatpush1.bf16.msra.mxu0 0
    %235 = vmatprep.mubr.bf16.mxu0 0
    %236 = vmatmul.mubr.bf16.gmra.mrb[0].mxu0 %v197
    %v237 = vpop.f32.mrb[0].mxu0
    %v238 = vadd.f32 %v194, %v237
    %v239 = vpop.f32.mrb[0].mxu0
    %v240 = vpop.f32.mrb[0].mxu0
    %v241 = vpop.f32.mrb[0].mxu0
    %242 = vdwg.mxu0
    %v243 = vadd.f32 %v187, %v238
    %v244 = vmax.f32 %v243, 0.0
    %vm245 = vcmask 261120
    %246 = vst.msk [vmem:[#allocation2] sm:$0xff] %vm245, %v244
    // Predicated region
    $region30: #{tpu_custom_call.1} parent=1 // pred_check
      _
    $region31: #{tpu_custom_call.1} parent=1 // pred_check_branch
      %248 = sbr.rel (0) target = $region33
    $region32: #{tpu_custom_call.1} parent=1 // pred_region
      %s250 = ssub.s32 128, 128
      %251 = vsyncadd [#allocation3], %s250
      %s253 = sshll.u32 [#allocation2], 4
      %s254 = int_to_ptr.vmem [resolvable:$true] %s253
      %256 = dma.vmem_to_hbm [thread:$0]  %s254, 128, %s7, [#allocation3]
    $region33: #{tpu_custom_call.1} parent=1 // pred_fallthru
      _
    // Predicated region
    $region34: #{tpu_custom_call.1} parent=1 // pred_check
      _
    $region35: #{tpu_custom_call.1} parent=1 // pred_check_branch
      %258 = sbr.rel (0) target = $region37
    $region36: #{tpu_custom_call.1} parent=1 // pred_region
      %259 = dma.done [#allocation3], 128
    $region37: #{tpu_custom_call.1} parent=1 // pred_fallthru
      _
    %260 = vsyncpa [#allocation3], 1

</llo_original>
